<compile_context>
chip_gen: v5e
topology: v5e:2x2
jax: 0.10.0
libtpu: 0.0.40
codegen_flags: <defaults>
</compile_context>

<pallas_src>
import jax
import jax.numpy as jnp
from jax.experimental import pallas as pl
from jax.experimental.pallas import tpu as pltpu


def _residual_kernel_full(x_ref, w_ref, b_ref, o_ref):
    # Weight fully resident in VMEM:  o = x @ W + b + x.
    x = x_ref[...]                                           # (tile_n, D)
    fn_x = jnp.dot(x.astype(jnp.bfloat16), w_ref[...],       # bf16 MXU, f32 acc
                   preferred_element_type=jnp.float32)
    o_ref[...] = (fn_x + b_ref[...] + x.astype(jnp.float32)).astype(o_ref.dtype)


def _residual_kernel_coltiled(x_ref, xres_ref, w_ref, b_ref, o_ref):
    # Output-column-tiled (large D):
    #   o[:, jT:(j+1)T] = x @ W[:, jT:(j+1)T] + b[jT:(j+1)T] + x[:, jT:(j+1)T]
    fn_x = jnp.dot(x_ref[...].astype(jnp.bfloat16), w_ref[...],
                   preferred_element_type=jnp.float32)
    o_ref[...] = (fn_x + b_ref[...] + xres_ref[...].astype(jnp.float32)
                  ).astype(o_ref.dtype)


def residual_linear(x, w, b, *, tile_n=512, d_out_tile=None, out_dtype=None,
                    vmem_limit_bytes=None):
    """out = x @ w + b + x   (Residual(nn.Linear(D, D)) with the add fused).

    x: [N, D]  f32 or bf16 (pass bf16 to halve activation HBM traffic).
    w: [D_in, D_out] = [D, D]; pre-cast to bf16 once at parameter-setup time
       when reused across calls (the wrapper only casts if it has to).
    b: [D] or [1, D].
    """
    N, D = x.shape
    assert w.shape == (D, D), w.shape
    out_dtype = jnp.dtype(x.dtype if out_dtype is None else out_dtype)

    if w.dtype != jnp.bfloat16:
        # NOTE: this is a full extra HBM pass over W — hoist the cast to
        # parameter-setup time when the weight is reused across calls.
        w = w.astype(jnp.bfloat16)
    b = b.astype(jnp.float32).reshape(1, D)

    # ---- row (token) tiling -------------------------------------------------
    tile_n = int(tile_n)
    if tile_n >= N:
        if N > 256:
            # v7x megacore: at least 2 row tiles so both TensorCores get work
            # (no effect on single-TC v5e/v6e).
            tile_n = max(256, pl.cdiv(pl.cdiv(N, 2), 8) * 8)
        else:
            tile_n = N          # one exact full-array block (no masking needed)
    else:
        tile_n = max(8, (tile_n // 8) * 8)
    n_row_tiles = pl.cdiv(N, tile_n)
    # No jnp.pad copy: a partial last row tile is handled by Pallas boundary
    # masking (padded input rows are unused garbage, OOB output rows dropped).

    # ---- output-column tiling (only when the bf16 weight block is large) ----
    w_block_budget = 8 * 1024 * 1024            # bf16 bytes per weight block
    if d_out_tile is None:
        d_out_tile = D
        if D % 128 == 0 and 2 * D * D > w_block_budget:
            cols = max(128, (w_block_budget // (2 * D)) // 128 * 128)
            while D % cols:
                cols -= 128
            d_out_tile = cols
    assert D % d_out_tile == 0 and (d_out_tile == D or d_out_tile % 128 == 0)
    d_out_tiles = D // d_out_tile

    # ---- VMEM budget derived from the blocks, capped below physical ---------
    if vmem_limit_bytes is None:
        w_bufs = 1 if d_out_tiles == 1 else 2
        need = (2 * tile_n * D * x.dtype.itemsize                     # x (2-buf)
                + 2 * tile_n * d_out_tile * out_dtype.itemsize        # out (2-buf)
                + w_bufs * (D * d_out_tile * 2 + d_out_tile * 4)      # W + bias
                + (0 if d_out_tiles == 1
                   else 2 * tile_n * d_out_tile * x.dtype.itemsize)   # residual cols
                + (4 << 20))                                          # headroom
        try:
            phys = int(pltpu.get_tpu_info().vmem_capacity_bytes)
        except Exception:
            phys = 64 * 1024 * 1024            # conservative: v7x per-TC VMEM
        vmem_limit_bytes = max(16 << 20, min(need, phys - (8 << 20)))

    cost = pl.CostEstimate(
        flops=2 * N * D * D,
        transcendentals=0,
        bytes_accessed=(
            N * D * x.dtype.itemsize
            + (1 if d_out_tiles == 1 else n_row_tiles) * D * D * 2
            + D * 4
            + (0 if d_out_tiles == 1 else N * D * x.dtype.itemsize)
            + N * D * out_dtype.itemsize))

    out_shape = jax.ShapeDtypeStruct((N, D), out_dtype)

    if d_out_tiles == 1:
        def make_call(single_buffer_invariants):
            def inv_spec(shape):
                if single_buffer_invariants:
                    # Grid-invariant operand: one VMEM buffer, DMA'd once.
                    return pl.BlockSpec(shape, lambda i: (0, 0),
                                        pipeline_mode=pl.Buffered(1))
                return pl.BlockSpec(shape, lambda i: (0, 0))
            return pl.pallas_call(
                _residual_kernel_full,
                out_shape=out_shape,
                grid_spec=pltpu.PrefetchScalarGridSpec(
                    num_scalar_prefetch=0,
                    grid=(n_row_tiles,),
                    in_specs=[
                        pl.BlockSpec((tile_n, D), lambda i: (i, 0)),  # x rows
                        inv_spec((D, D)),                             # bf16 W (resident)
                        inv_spec((1, D)),                             # bias row
                    ],
                    out_specs=pl.BlockSpec((tile_n, D), lambda i: (i, 0)),
                ),
                compiler_params=pltpu.CompilerParams(
                    dimension_semantics=("parallel",),
                    vmem_limit_bytes=vmem_limit_bytes),
                cost_estimate=cost,
            )
        try:
            return make_call(True)(x, w, b)
        except Exception:
            # pipeline_mode=pl.Buffered(1) unsupported on this jax version:
            # fall back to default double-buffered invariant operands.
            return make_call(False)(x, w, b)

    # Large-D path: stream (D, d_out_tile) weight blocks so the weight never
    # needs to be fully resident (fits v7x's 64 MiB VMEM at D >= 4096).
    return pl.pallas_call(
        _residual_kernel_coltiled,
        out_shape=out_shape,
        grid_spec=pltpu.PrefetchScalarGridSpec(
            num_scalar_prefetch=0,
            grid=(n_row_tiles, d_out_tiles),
            in_specs=[
                pl.BlockSpec((tile_n, D), lambda i, j: (i, 0)),           # x (LHS, reused over j)
                pl.BlockSpec((tile_n, d_out_tile), lambda i, j: (i, j)),  # x residual columns
                pl.BlockSpec((D, d_out_tile), lambda i, j: (0, j)),       # weight column block
                pl.BlockSpec((1, d_out_tile), lambda i, j: (0, j)),       # bias column block
            ],
            out_specs=pl.BlockSpec((tile_n, d_out_tile), lambda i, j: (i, j)),
        ),
        compiler_params=pltpu.CompilerParams(
            dimension_semantics=("parallel", "arbitrary"),
            vmem_limit_bytes=vmem_limit_bytes),
        cost_estimate=cost,
    )(x, x, w, b)


class Residual:
    """JAX mirror of the PyTorch Residual wrapper: forward(x) = fn(x) + x."""

    def __init__(self, fn):
        self.fn = fn

    def __call__(self, x, **kwargs):
        return self.fn(x, **kwargs) + x


if __name__ == "__main__":
    key = jax.random.PRNGKey(0)
    k_x, k_w, k_b, k_x2 = jax.random.split(key, 4)

    batch, seq, hidden = 2, 8, 128  # small transformer-ish shapes
    x = jax.random.normal(k_x, (batch, seq, hidden), dtype=jnp.float32)

    # fn = Linear(hidden, hidden): PyTorch stores weight [D_out, D_in] and
    # computes x @ W.T; transpose + bf16 cast ONCE (hoisted out of hot path).
    w_pt = jax.random.normal(k_w, (hidden, hidden), dtype=jnp.float32) * 0.02
    b_pt = jax.random.normal(k_b, (hidden,), dtype=jnp.float32) * 0.02
    w_bf16 = w_pt.T.astype(jnp.bfloat16)     # [D_in, D_out], bf16, reused
    b = b_pt                                 # [D]

    def ref(x2d, ref_dtype):
        return (jnp.dot(x2d.astype(jnp.bfloat16), w_bf16,
                        preferred_element_type=jnp.float32)
                + b.reshape(1, -1).astype(jnp.float32)
                + x2d.astype(jnp.float32)).astype(ref_dtype)

    # 1) f32 activations, f32 output (module-default semantics).
    x2d = x.reshape(batch * seq, hidden)
    out = residual_linear(x2d, w_bf16, b)
    jax.block_until_ready(out)
    assert out.shape == x2d.shape and out.dtype == x2d.dtype
    assert jnp.allclose(out, ref(x2d, jnp.float32), atol=1e-4, rtol=1e-4)
    # Module-semantics reference: Residual(Linear) in full f32 (bf16 tolerance).
    ref_f32 = Residual(lambda t: t @ w_pt.T + b_pt)(x2d)
    assert jnp.allclose(out, ref_f32, atol=3e-2, rtol=3e-2)

    # 2) bf16 activation streaming (halves x/out HBM traffic; kernel is
    #    memory-bound at these arithmetic intensities).
    x_bf16 = x2d.astype(jnp.bfloat16)
    out_bf16 = residual_linear(x_bf16, w_bf16, b)
    jax.block_until_ready(out_bf16)
    assert out_bf16.dtype == jnp.bfloat16
    assert jnp.allclose(out_bf16.astype(jnp.float32),
                        ref(x_bf16, jnp.float32), atol=3e-2, rtol=3e-2)

    # 3) Ragged row count: no jnp.pad copy, single exact full-array block.
    x_rag = jax.random.normal(k_x2, (21, hidden), dtype=jnp.float32)
    out_rag = residual_linear(x_rag, w_bf16, b)
    jax.block_until_ready(out_rag)
    assert jnp.allclose(out_rag, ref(x_rag, jnp.float32), atol=1e-4, rtol=1e-4)

    # 4) Output-column-tiled path (forced small tiles here; auto-engages in
    #    production when the bf16 weight block exceeds ~8 MiB, e.g. D >= 2304).
    D2 = 256
    kw2, kb2, kx3 = jax.random.split(k_w, 3)
    w2 = (jax.random.normal(kw2, (D2, D2), dtype=jnp.float32) * 0.02
          ).astype(jnp.bfloat16)
    b2 = jax.random.normal(kb2, (D2,), dtype=jnp.float32) * 0.02
    x3 = jax.random.normal(kx3, (48, D2), dtype=jnp.float32)
    out3 = residual_linear(x3, w2, b2, tile_n=16, d_out_tile=128)
    jax.block_until_ready(out3)
    ref3 = (jnp.dot(x3.astype(jnp.bfloat16), w2,
                    preferred_element_type=jnp.float32)
            + b2.reshape(1, -1) + x3)
    assert jnp.allclose(out3, ref3, atol=1e-4, rtol=1e-4)

    print("KERNEL_OK")
</pallas_src>

<mosaic_0001>
module attributes {stable_mosaic.version = 11 : i64} {
  func.func @_residual_kernel_full(%arg0: i32, %arg1: memref<16x128xf32, #tpu.memory_space<vmem>>, %arg2: memref<128x128xbf16, #tpu.memory_space<vmem>>, %arg3: memref<1x128xf32, #tpu.memory_space<vmem>>, %arg4: memref<16x128xf32, #tpu.memory_space<vmem>>) attributes {dimension_semantics = [#tpu.dimension_semantics<parallel>], iteration_bounds = array<i64: 1>, scalar_prefetch = 0 : i64, scratch_operands = 0 : i64, tpu.core_type = #tpu.core_type<tc>, window_params = [{transform_indices = @transform_0, window_bounds = array<i64: 16, 128>}, {pipeline_mode = #tpu.pipeline_mode<synchronous>, transform_indices = @transform_1, window_bounds = array<i64: 128, 128>}, {pipeline_mode = #tpu.pipeline_mode<synchronous>, transform_indices = @transform_2, window_bounds = array<i64: 1, 128>}, {transform_indices = @transform_3, window_bounds = array<i64: 16, 128>}]} {
    %c0 = arith.constant 0 : index
    %c0_0 = arith.constant 0 : index
    %0 = vector.load %arg1[%c0, %c0_0] : memref<16x128xf32, #tpu.memory_space<vmem>>, vector<16x128xf32>
    %1 = arith.truncf %0 : vector<16x128xf32> to vector<16x128xbf16>
    %c0_1 = arith.constant 0 : index
    %c0_2 = arith.constant 0 : index
    %2 = vector.load %arg2[%c0_1, %c0_2] : memref<128x128xbf16, #tpu.memory_space<vmem>>, vector<128x128xbf16>
    %cst = arith.constant dense<0.000000e+00> : vector<16x128xf32>
    %3 = tpu.matmul %1, %2, %cst {dimension_numbers = #tpu.dot_dimension_numbers<[1], [0], [0], [1], [0, 0, 1, 1], [], []>} : vector<16x128xbf16>, vector<128x128xbf16>, vector<16x128xf32> -> vector<16x128xf32>
    %c0_3 = arith.constant 0 : index
    %c0_4 = arith.constant 0 : index
    %4 = vector.load %arg3[%c0_3, %c0_4] : memref<1x128xf32, #tpu.memory_space<vmem>>, vector<1x128xf32>
    %5 = vector.broadcast %4 : vector<1x128xf32> to vector<16x128xf32>
    %6 = arith.addf %3, %5 : vector<16x128xf32>
    %7 = arith.addf %6, %0 : vector<16x128xf32>
    %c0_5 = arith.constant 0 : index
    %c0_6 = arith.constant 0 : index
    %8 = vector.load %arg4[%c0_5, %c0_6] : memref<16x128xf32, #tpu.memory_space<vmem>>, vector<16x128xf32>
    tpu.vector_store %arg4[%c0_5, %c0_6], %7 {strides = array<i32>} : memref<16x128xf32, #tpu.memory_space<vmem>>, vector<16x128xf32>,
    return
  }
  func.func @transform_0(%arg0: i32) -> (i32, i32) {
    %c0_i32 = arith.constant 0 : i32
    %c0_i32_0 = arith.constant 0 : i32
    return %arg0, %c0_i32 : i32, i32
  }
  func.func @transform_1(%arg0: i32) -> (i32, i32) {
    %c0_i32 = arith.constant 0 : i32
    %c0_i32_0 = arith.constant 0 : i32
    %c0_i32_1 = arith.constant 0 : i32
    return %c0_i32, %c0_i32_0 : i32, i32
  }
  func.func @transform_2(%arg0: i32) -> (i32, i32) {
    %c0_i32 = arith.constant 0 : i32
    %c0_i32_0 = arith.constant 0 : i32
    %c0_i32_1 = arith.constant 0 : i32
    return %c0_i32, %c0_i32_0 : i32, i32
  }
  func.func @transform_3(%arg0: i32) -> (i32, i32) {
    %c0_i32 = arith.constant 0 : i32
    %c0_i32_0 = arith.constant 0 : i32
    return %arg0, %c0_i32 : i32, i32
  }
}

module attributes {stable_mosaic.version = 11 : i64} {
  func.func @_residual_kernel_full(%arg0: i32, %arg1: memref<16x128xf32, #tpu.memory_space<vmem>>, %arg2: memref<128x128xbf16, #tpu.memory_space<vmem>>, %arg3: memref<1x128xf32, #tpu.memory_space<vmem>>, %arg4: memref<16x128xf32, #tpu.memory_space<vmem>>) attributes {dimension_semantics = [#tpu.dimension_semantics<parallel>], iteration_bounds = array<i64: 1>, scalar_prefetch = 0 : i64, scratch_operands = 0 : i64, tpu.core_type = #tpu.core_type<tc>, window_params = [{transform_indices = @transform_0, window_bounds = array<i64: 16, 128>}, {pipeline_mode = #tpu.pipeline_mode<synchronous>, transform_indices = @transform_1, window_bounds = array<i64: 128, 128>}, {pipeline_mode = #tpu.pipeline_mode<synchronous>, transform_indices = @transform_2, window_bounds = array<i64: 1, 128>}, {transform_indices = @transform_3, window_bounds = array<i64: 16, 128>}]} {
    %c0 = arith.constant 0 : index
    %c0_0 = arith.constant 0 : index
    %0 = vector.load %arg1[%c0, %c0_0] : memref<16x128xf32, #tpu.memory_space<vmem>>, vector<16x128xf32>
    %1 = arith.truncf %0 : vector<16x128xf32> to vector<16x128xbf16>
    %c0_1 = arith.constant 0 : index
    %c0_2 = arith.constant 0 : index
    %2 = vector.load %arg2[%c0_1, %c0_2] : memref<128x128xbf16, #tpu.memory_space<vmem>>, vector<128x128xbf16>
    %cst = arith.constant dense<0.000000e+00> : vector<16x128xf32>
    %3 = tpu.matmul %1, %2, %cst {dimension_numbers = #tpu.dot_dimension_numbers<[1], [0], [0], [1], [0, 0, 1, 1], [], []>} : vector<16x128xbf16>, vector<128x128xbf16>, vector<16x128xf32> -> vector<16x128xf32>
    %c0_3 = arith.constant 0 : index
    %c0_4 = arith.constant 0 : index
    %4 = vector.load %arg3[%c0_3, %c0_4] : memref<1x128xf32, #tpu.memory_space<vmem>>, vector<1x128xf32>
    %5 = vector.broadcast %4 : vector<1x128xf32> to vector<16x128xf32>
    %6 = arith.addf %3, %5 : vector<16x128xf32>
    %7 = arith.addf %6, %0 : vector<16x128xf32>
    %c0_5 = arith.constant 0 : index
    %c0_6 = arith.constant 0 : index
    %8 = vector.load %arg4[%c0_5, %c0_6] : memref<16x128xf32, #tpu.memory_space<vmem>>, vector<16x128xf32>
    tpu.vector_store %arg4[%c0_5, %c0_6], %7 {strides = array<i32>} : memref<16x128xf32, #tpu.memory_space<vmem>>, vector<16x128xf32>,
    return
  }
  func.func @transform_0(%arg0: i32) -> (i32, i32) {
    %c0_i32 = arith.constant 0 : i32
    %c0_i32_0 = arith.constant 0 : i32
    return %arg0, %c0_i32 : i32, i32
  }
  func.func @transform_1(%arg0: i32) -> (i32, i32) {
    %c0_i32 = arith.constant 0 : i32
    %c0_i32_0 = arith.constant 0 : i32
    %c0_i32_1 = arith.constant 0 : i32
    return %c0_i32, %c0_i32_0 : i32, i32
  }
  func.func @transform_2(%arg0: i32) -> (i32, i32) {
    %c0_i32 = arith.constant 0 : i32
    %c0_i32_0 = arith.constant 0 : i32
    %c0_i32_1 = arith.constant 0 : i32
    return %c0_i32, %c0_i32_0 : i32, i32
  }
  func.func @transform_3(%arg0: i32) -> (i32, i32) {
    %c0_i32 = arith.constant 0 : i32
    %c0_i32_0 = arith.constant 0 : i32
    return %arg0, %c0_i32 : i32, i32
  }
}

</mosaic_0001>

<llo_original>
// kernel: tpu_custom_call.1
$region0: #{tpu_custom_call.1}
  #allocation0 [shape = 'u32[]', space=smem, size = 0x4, offset = 0x4, fixed_abs, tag = 'smem constant byte address 0x4 - core index']
  #allocation1 [shape = 'u32[72,128]{1,0:T(1,128)}', space=vmem, size = 0x9000, scoped, tag = 'internal scratch']
  %s0 = inlined_call_operand.hbm [shape: f32[16,128], index: 0, kind: input, shape index: {}]
  %s1 = inlined_call_operand.hbm [shape: bf16[128,128], index: 1, kind: input, shape index: {}]
  %s2 = inlined_call_operand.vmem [shape: f32[1,128], index: 2, kind: input, shape index: {}]
  %s3 = inlined_call_operand.hbm [shape: f32[16,128], index: 3, kind: output, shape index: {}]
  %s4 = sld [smem:[#allocation0]]
  $region30: #{tpu_custom_call.1} parent=0
    _
  %s6 = ssub.s32 1, %s4
  %s7 = scalar_select 0, %s6, %s4
  $region1: #{tpu_custom_call.1} parent=0
    #allocation2 [shape = 'u8[8192]{0}', space=vmem, size = 0x2000, scoped, tag = 'input window, operand 0, single buffered']
    #allocation3 [shape = 's32[1]{0}', space=sflag, size = 0x4, scoped, tag = 'scoped memory for tpu_custom_call.1']
    #allocation4 [shape = 's32[1]{0}', space=sflag, size = 0x4, scoped, tag = 'scoped memory for tpu_custom_call.1']
    #allocation5 [shape = 'u8[32768]{0}', space=vmem, size = 0x8000, scoped, tag = 'input window, operand 1, single buffered']
    #allocation6 [shape = 's32[1]{0}', space=sflag, size = 0x4, scoped, tag = 'scoped memory for tpu_custom_call.1']
    #allocation7 [shape = 'u8[8192]{0}', space=vmem, size = 0x2000, scoped, tag = 'output window, operand 0, single buffered']
    %8 = vsyncpa [#allocation3], 0
    %9 = vsyncpa [#allocation6], 0
    %10 = vsyncpa [#allocation4], 0
    // Predicated region
    $region2: #{tpu_custom_call.1} parent=1 // pred_check
      _
    $region3: #{tpu_custom_call.1} parent=1 // pred_check_branch
      %12 = sbr.rel (0) target = $region5
    $region4: #{tpu_custom_call.1} parent=1 // pred_region
      %14 = vsyncadd [#allocation3], 0
      %s15 = sshll.u32 %s0, 4
      %s16 = int_to_ptr.hbm [resolvable:$true] %s15
      %s17 = sshll.u32 [#allocation2], 4
      %s18 = int_to_ptr.vmem [resolvable:$true] %s17
      %23 = dma.hbm_to_vmem [thread:$0]  %s16, 256, %s18, [#allocation3], 128, 128, 8
    $region5: #{tpu_custom_call.1} parent=1 // pred_fallthru
      _
    // Predicated region
    $region6: #{tpu_custom_call.1} parent=1 // pred_check
      _
    $region7: #{tpu_custom_call.1} parent=1 // pred_check_branch
      %25 = sbr.rel (0) target = $region9
    $region8: #{tpu_custom_call.1} parent=1 // pred_region
      %27 = vsyncadd [#allocation6], 0
      %s28 = sshll.u32 %s1, 4
      %s29 = int_to_ptr.hbm [resolvable:$true] %s28
      %s30 = sshll.u32 [#allocation5], 4
      %s31 = int_to_ptr.vmem [resolvable:$true] %s30
      %36 = dma.hbm_to_vmem [thread:$0]  %s29, 1024, %s31, [#allocation6], 64, 64, 4
    $region9: #{tpu_custom_call.1} parent=1 // pred_fallthru
      _
    // Predicated region
    $region10: #{tpu_custom_call.1} parent=1 // pred_check
      _
    $region11: #{tpu_custom_call.1} parent=1 // pred_check_branch
      %38 = sbr.rel (0) target = $region13
    $region12: #{tpu_custom_call.1} parent=1 // pred_region
      _
    $region13: #{tpu_custom_call.1} parent=1 // pred_fallthru
      _
    // Predicated region
    $region14: #{tpu_custom_call.1} parent=1 // pred_check
      _
    $region15: #{tpu_custom_call.1} parent=1 // pred_check_branch
      %40 = sbr.rel (0) target = $region17
    $region16: #{tpu_custom_call.1} parent=1 // pred_region
      %42 = dma.done [#allocation3], 256
    $region17: #{tpu_custom_call.1} parent=1 // pred_fallthru
      _
    // Predicated region
    $region18: #{tpu_custom_call.1} parent=1 // pred_check
      _
    $region19: #{tpu_custom_call.1} parent=1 // pred_check_branch
      %44 = sbr.rel (0) target = $region21
    $region20: #{tpu_custom_call.1} parent=1 // pred_region
      %46 = dma.done [#allocation6], 1024
    $region21: #{tpu_custom_call.1} parent=1 // pred_fallthru
      _
    %v47 = vld [vmem:[#allocation2] sm:$0xff]
    %v48 = vld [vmem:[#allocation2 + $0x8] sm:$0xff]
    %v49 = vpack.c.bf16 %v48, %v47
    %v50 = vld [vmem:[#allocation5] sm:$0xf]
    %v51 = vld [vmem:[#allocation5 + $0x4] sm:$0xf]
    %v52 = vld [vmem:[#allocation5 + $0x8] sm:$0xf]
    %v53 = vld [vmem:[#allocation5 + $0xc] sm:$0xf]
    %v54 = vld [vmem:[#allocation5 + $0x10] sm:$0xf]
    %v55 = vld [vmem:[#allocation5 + $0x14] sm:$0xf]
    %v56 = vld [vmem:[#allocation5 + $0x18] sm:$0xf]
    %v57 = vld [vmem:[#allocation5 + $0x1c] sm:$0xf]
    %v58 = vld [vmem:[#allocation5 + $0x20] sm:$0xf]
    %v59 = vld [vmem:[#allocation5 + $0x24] sm:$0xf]
    %v60 = vld [vmem:[#allocation5 + $0x28] sm:$0xf]
    %v61 = vld [vmem:[#allocation5 + $0x2c] sm:$0xf]
    %v62 = vld [vmem:[#allocation5 + $0x30] sm:$0xf]
    %v63 = vld [vmem:[#allocation5 + $0x34] sm:$0xf]
    %v64 = vld [vmem:[#allocation5 + $0x38] sm:$0xf]
    %v65 = vld [vmem:[#allocation5 + $0x3c] sm:$0xf]
    %v66 = vld [vmem:[%s2] sm:$0x1]
    %v68 = vperm.slane %v66, 0
    %v86 = vunpack.c.l.b16 %v50
    %v87 = vunpack.c.l.b16 %v51
    %v88 = vunpack.c.l.b16 %v52
    %v89 = vunpack.c.l.b16 %v53
    %v90 = vunpack.c.l.b16 %v54
    %v91 = vunpack.c.l.b16 %v55
    %v92 = vunpack.c.l.b16 %v56
    %v93 = vunpack.c.l.b16 %v57
    %v94 = vunpack.c.l.b16 %v58
    %v95 = vunpack.c.l.b16 %v59
    %v96 = vunpack.c.l.b16 %v60
    %v97 = vunpack.c.l.b16 %v61
    %v98 = vunpack.c.l.b16 %v62
    %v99 = vunpack.c.l.b16 %v63
    %v100 = vunpack.c.l.b16 %v64
    %v101 = vunpack.c.l.b16 %v65
    %v102 = vpack.c.b16 %v87, %v86
    %v103 = vpack.c.b16 %v89, %v88
    %v104 = vpack.c.b16 %v91, %v90
    %v105 = vpack.c.b16 %v93, %v92
    %v106 = vpack.c.b16 %v95, %v94
    %v107 = vpack.c.b16 %v97, %v96
    %v108 = vpack.c.b16 %v99, %v98
    %v109 = vpack.c.b16 %v101, %v100
    %118 = vmatpush.bf16.msra.mxu0 %v109
    %119 = vmatpush.bf16.msra.mxu0 %v108
    %120 = vmatpush.bf16.msra.mxu0 %v107
    %121 = vmatpush.bf16.msra.mxu0 %v106
    %122 = vmatpush.bf16.msra.mxu0 %v105
    %123 = vmatpush.bf16.msra.mxu0 %v104
    %124 = vmatpush.bf16.msra.mxu0 %v103
    %125 = vmatpush.bf16.msra.mxu0 %v102
    %126 = vmatmul.bf16.gmra.mxu0 %v49
    %v127 = vpop.f32.mrf.mxu0
    %v128 = vadd.f32 %v68, %v127
    %v129 = vpop.f32.mrf.mxu0
    %v130 = vadd.f32 %v68, %v129
    %131 = vdwg.mxu0
    %v132 = vadd.f32 %v128, %v47
    %v133 = vadd.f32 %v130, %v48
    %134 = vst [vmem:[#allocation7] sm:$0xff] %v132
    %135 = vst [vmem:[#allocation7 + $0x8] sm:$0xff] %v133
    // Predicated region
    $region22: #{tpu_custom_call.1} parent=1 // pred_check
      _
    $region23: #{tpu_custom_call.1} parent=1 // pred_check_branch
      %137 = sbr.rel (0) target = $region25
    $region24: #{tpu_custom_call.1} parent=1 // pred_region
      %139 = vsyncadd [#allocation4], 0
      %s140 = sshll.u32 [#allocation7], 4
      %s141 = int_to_ptr.vmem [resolvable:$true] %s140
      %s142 = sshll.u32 %s3, 4
      %s143 = int_to_ptr.hbm [resolvable:$true] %s142
      %148 = dma.vmem_to_hbm [thread:$0]  %s141, 256, %s143, [#allocation4], 128, 128, 8
    $region25: #{tpu_custom_call.1} parent=1 // pred_fallthru
      _
    // Predicated region
    $region26: #{tpu_custom_call.1} parent=1 // pred_check
      _
    $region27: #{tpu_custom_call.1} parent=1 // pred_check_branch
      %150 = sbr.rel (0) target = $region29
    $region28: #{tpu_custom_call.1} parent=1 // pred_region
      %152 = dma.done [#allocation4], 256
    $region29: #{tpu_custom_call.1} parent=1 // pred_fallthru
      _
    %153 = vsyncpa [#allocation3], 1
    %154 = vsyncpa [#allocation6], 1
    %155 = vsyncpa [#allocation4], 1

// kernel: tpu_custom_call.1
$region0: #{tpu_custom_call.1}
  #allocation0 [shape = 'u32[]', space=smem, size = 0x4, offset = 0x4, fixed_abs, tag = 'smem constant byte address 0x4 - core index']
  #allocation1 [shape = 'u32[72,128]{1,0:T(1,128)}', space=vmem, size = 0x9000, scoped, tag = 'internal scratch']
  %s0 = inlined_call_operand.hbm [shape: f32[16,128], index: 0, kind: input, shape index: {}]
  %s1 = inlined_call_operand.hbm [shape: bf16[128,128], index: 1, kind: input, shape index: {}]
  %s2 = inlined_call_operand.vmem [shape: f32[1,128], index: 2, kind: input, shape index: {}]
  %s3 = inlined_call_operand.hbm [shape: f32[16,128], index: 3, kind: output, shape index: {}]
  %s4 = sld [smem:[#allocation0]]
  $region30: #{tpu_custom_call.1} parent=0
    _
  %s6 = ssub.s32 1, %s4
  %s7 = scalar_select 0, %s6, %s4
  $region1: #{tpu_custom_call.1} parent=0
    #allocation2 [shape = 'u8[8192]{0}', space=vmem, size = 0x2000, scoped, tag = 'input window, operand 0, single buffered']
    #allocation3 [shape = 's32[1]{0}', space=sflag, size = 0x4, scoped, tag = 'scoped memory for tpu_custom_call.1']
    #allocation4 [shape = 's32[1]{0}', space=sflag, size = 0x4, scoped, tag = 'scoped memory for tpu_custom_call.1']
    #allocation5 [shape = 'u8[32768]{0}', space=vmem, size = 0x8000, scoped, tag = 'input window, operand 1, single buffered']
    #allocation6 [shape = 's32[1]{0}', space=sflag, size = 0x4, scoped, tag = 'scoped memory for tpu_custom_call.1']
    #allocation7 [shape = 'u8[8192]{0}', space=vmem, size = 0x2000, scoped, tag = 'output window, operand 0, single buffered']
    %8 = vsyncpa [#allocation3], 0
    %9 = vsyncpa [#allocation6], 0
    %10 = vsyncpa [#allocation4], 0
    // Predicated region
    $region2: #{tpu_custom_call.1} parent=1 // pred_check
      _
    $region3: #{tpu_custom_call.1} parent=1 // pred_check_branch
      %12 = sbr.rel (0) target = $region5
    $region4: #{tpu_custom_call.1} parent=1 // pred_region
      %14 = vsyncadd [#allocation3], 0
      %s15 = sshll.u32 %s0, 4
      %s16 = int_to_ptr.hbm [resolvable:$true] %s15
      %s17 = sshll.u32 [#allocation2], 4
      %s18 = int_to_ptr.vmem [resolvable:$true] %s17
      %23 = dma.hbm_to_vmem [thread:$0]  %s16, 256, %s18, [#allocation3], 128, 128, 8
    $region5: #{tpu_custom_call.1} parent=1 // pred_fallthru
      _
    // Predicated region
    $region6: #{tpu_custom_call.1} parent=1 // pred_check
      _
    $region7: #{tpu_custom_call.1} parent=1 // pred_check_branch
      %25 = sbr.rel (0) target = $region9
    $region8: #{tpu_custom_call.1} parent=1 // pred_region
      %27 = vsyncadd [#allocation6], 0
      %s28 = sshll.u32 %s1, 4
      %s29 = int_to_ptr.hbm [resolvable:$true] %s28
      %s30 = sshll.u32 [#allocation5], 4
      %s31 = int_to_ptr.vmem [resolvable:$true] %s30
      %36 = dma.hbm_to_vmem [thread:$0]  %s29, 1024, %s31, [#allocation6], 64, 64, 4
    $region9: #{tpu_custom_call.1} parent=1 // pred_fallthru
      _
    // Predicated region
    $region10: #{tpu_custom_call.1} parent=1 // pred_check
      _
    $region11: #{tpu_custom_call.1} parent=1 // pred_check_branch
      %38 = sbr.rel (0) target = $region13
    $region12: #{tpu_custom_call.1} parent=1 // pred_region
      _
    $region13: #{tpu_custom_call.1} parent=1 // pred_fallthru
      _
    // Predicated region
    $region14: #{tpu_custom_call.1} parent=1 // pred_check
      _
    $region15: #{tpu_custom_call.1} parent=1 // pred_check_branch
      %40 = sbr.rel (0) target = $region17
    $region16: #{tpu_custom_call.1} parent=1 // pred_region
      %42 = dma.done [#allocation3], 256
    $region17: #{tpu_custom_call.1} parent=1 // pred_fallthru
      _
    // Predicated region
    $region18: #{tpu_custom_call.1} parent=1 // pred_check
      _
    $region19: #{tpu_custom_call.1} parent=1 // pred_check_branch
      %44 = sbr.rel (0) target = $region21
    $region20: #{tpu_custom_call.1} parent=1 // pred_region
      %46 = dma.done [#allocation6], 1024
    $region21: #{tpu_custom_call.1} parent=1 // pred_fallthru
      _
    %v47 = vld [vmem:[#allocation2] sm:$0xff]
    %v48 = vld [vmem:[#allocation2 + $0x8] sm:$0xff]
    %v49 = vpack.c.bf16 %v48, %v47
    %v50 = vld [vmem:[#allocation5] sm:$0xf]
    %v51 = vld [vmem:[#allocation5 + $0x4] sm:$0xf]
    %v52 = vld [vmem:[#allocation5 + $0x8] sm:$0xf]
    %v53 = vld [vmem:[#allocation5 + $0xc] sm:$0xf]
    %v54 = vld [vmem:[#allocation5 + $0x10] sm:$0xf]
    %v55 = vld [vmem:[#allocation5 + $0x14] sm:$0xf]
    %v56 = vld [vmem:[#allocation5 + $0x18] sm:$0xf]
    %v57 = vld [vmem:[#allocation5 + $0x1c] sm:$0xf]
    %v58 = vld [vmem:[#allocation5 + $0x20] sm:$0xf]
    %v59 = vld [vmem:[#allocation5 + $0x24] sm:$0xf]
    %v60 = vld [vmem:[#allocation5 + $0x28] sm:$0xf]
    %v61 = vld [vmem:[#allocation5 + $0x2c] sm:$0xf]
    %v62 = vld [vmem:[#allocation5 + $0x30] sm:$0xf]
    %v63 = vld [vmem:[#allocation5 + $0x34] sm:$0xf]
    %v64 = vld [vmem:[#allocation5 + $0x38] sm:$0xf]
    %v65 = vld [vmem:[#allocation5 + $0x3c] sm:$0xf]
    %v66 = vld [vmem:[%s2] sm:$0x1]
    %v68 = vperm.slane %v66, 0
    %v86 = vunpack.c.l.b16 %v50
    %v87 = vunpack.c.l.b16 %v51
    %v88 = vunpack.c.l.b16 %v52
    %v89 = vunpack.c.l.b16 %v53
    %v90 = vunpack.c.l.b16 %v54
    %v91 = vunpack.c.l.b16 %v55
    %v92 = vunpack.c.l.b16 %v56
    %v93 = vunpack.c.l.b16 %v57
    %v94 = vunpack.c.l.b16 %v58
    %v95 = vunpack.c.l.b16 %v59
    %v96 = vunpack.c.l.b16 %v60
    %v97 = vunpack.c.l.b16 %v61
    %v98 = vunpack.c.l.b16 %v62
    %v99 = vunpack.c.l.b16 %v63
    %v100 = vunpack.c.l.b16 %v64
    %v101 = vunpack.c.l.b16 %v65
    %v102 = vpack.c.b16 %v87, %v86
    %v103 = vpack.c.b16 %v89, %v88
    %v104 = vpack.c.b16 %v91, %v90
    %v105 = vpack.c.b16 %v93, %v92
    %v106 = vpack.c.b16 %v95, %v94
    %v107 = vpack.c.b16 %v97, %v96
    %v108 = vpack.c.b16 %v99, %v98
    %v109 = vpack.c.b16 %v101, %v100
    %118 = vmatpush.bf16.msra.mxu0 %v109
    %119 = vmatpush.bf16.msra.mxu0 %v108
    %120 = vmatpush.bf16.msra.mxu0 %v107
    %121 = vmatpush.bf16.msra.mxu0 %v106
    %122 = vmatpush.bf16.msra.mxu0 %v105
    %123 = vmatpush.bf16.msra.mxu0 %v104
    %124 = vmatpush.bf16.msra.mxu0 %v103
    %125 = vmatpush.bf16.msra.mxu0 %v102
    %126 = vmatmul.bf16.gmra.mxu0 %v49
    %v127 = vpop.f32.mrf.mxu0
    %v128 = vadd.f32 %v68, %v127
    %v129 = vpop.f32.mrf.mxu0
    %v130 = vadd.f32 %v68, %v129
    %131 = vdwg.mxu0
    %v132 = vadd.f32 %v128, %v47
    %v133 = vadd.f32 %v130, %v48
    %134 = vst [vmem:[#allocation7] sm:$0xff] %v132
    %135 = vst [vmem:[#allocation7 + $0x8] sm:$0xff] %v133
    // Predicated region
    $region22: #{tpu_custom_call.1} parent=1 // pred_check
      _
    $region23: #{tpu_custom_call.1} parent=1 // pred_check_branch
      %137 = sbr.rel (0) target = $region25
    $region24: #{tpu_custom_call.1} parent=1 // pred_region
      %139 = vsyncadd [#allocation4], 0
      %s140 = sshll.u32 [#allocation7], 4
      %s141 = int_to_ptr.vmem [resolvable:$true] %s140
      %s142 = sshll.u32 %s3, 4
      %s143 = int_to_ptr.hbm [resolvable:$true] %s142
      %148 = dma.vmem_to_hbm [thread:$0]  %s141, 256, %s143, [#allocation4], 128, 128, 8
    $region25: #{tpu_custom_call.1} parent=1 // pred_fallthru
      _
    // Predicated region
    $region26: #{tpu_custom_call.1} parent=1 // pred_check
      _
    $region27: #{tpu_custom_call.1} parent=1 // pred_check_branch
      %150 = sbr.rel (0) target = $region29
    $region28: #{tpu_custom_call.1} parent=1 // pred_region
      %152 = dma.done [#allocation4], 256
    $region29: #{tpu_custom_call.1} parent=1 // pred_fallthru
      _
    %153 = vsyncpa [#allocation3], 1
    %154 = vsyncpa [#allocation6], 1
    %155 = vsyncpa [#allocation4], 1

</llo_original>
